<compile_context>
chip_gen: v7x
topology: tpu7x:2x2x1
jax: 0.10.0
libtpu: 0.0.40
codegen_flags: <defaults>
</compile_context>

<pallas_src>
import jax
import jax.numpy as jnp
from jax.experimental import pallas as pl
from jax.experimental.pallas import tpu as pltpu

_INV_SUM = 1.0 / 16.0      # taps [[1,2,1],[2,4,2],[1,2,1]] sum to 16
_LIVE_COPIES = 10          # ~live block-sized f32 copies per step (pipeline
                           #  buffers + scratch + compiler temporaries)
_MIN_STEPS = 8             # feed both v7x TensorCores, keep pipeline primed
_STEP_FLOOR = 512 << 10    # don't shrink steps below ~0.5 MiB just to add steps


def _round_up(v, m):
    return ((v + m - 1) // m) * m


def _budgets():
    """Generation-aware VMEM / step-size budgets."""
    phys = 64 << 20                       # conservative default (v7x-class)
    try:
        info = pltpu.get_tpu_info()
        phys = int(getattr(info, "vmem_capacity_bytes", phys))
    except Exception:
        pass
    if phys >= (96 << 20):
        # v5e / v6e: 128 MiB physical VMEM, ~0.8-1.4 TB/s HBM.
        return {"tile_budget": 56 << 20, "vmem_limit": 88 << 20,
                "target_step_bytes": 2 << 20}
    # v7x-class (or unknown): 64 MiB physical VMEM, ~3.2 TB/s HBM
    # -> bigger per-step traffic target, tighter VMEM accounting.
    return {"tile_budget": 30 << 20, "vmem_limit": 46 << 20,
            "target_step_bytes": 3 << 20}


# ---------------------------------------------------------------------------
# Kernel bodies
# ---------------------------------------------------------------------------

def _hblur(x, W):
    """Horizontal [1,2,1] with zero boundary.  x: (TB, H, W) f32."""
    wi = jax.lax.broadcasted_iota(jnp.int32, (1, 1, W), 2)
    # roll(x, 1)[..., w]   == x[..., w-1]  (left neighbour)
    # roll(x, W-1)[..., w] == x[..., w+1]  (right neighbour)
    left = jnp.where(wi == 0, 0.0, pltpu.roll(x, 1, axis=2))
    right = jnp.where(wi == W - 1, 0.0, pltpu.roll(x, W - 1, axis=2))
    return left + (x + x) + right


def _vblur(h, pad_ref):
    """Vertical [1,2,1] with zero boundary via a vertical-only halo scratch.

    h: (TB, H, W) f32; pad_ref: (TB, H+2, W) f32 scratch.  Only the two halo
    rows are zeroed; the middle tap reuses `h` directly (no re-read).
    """
    TB, H, W = h.shape
    zrow = jnp.zeros((TB, 1, W), jnp.float32)
    pad_ref[:, 0:1, :] = zrow
    pad_ref[:, H + 1:H + 2, :] = zrow
    pad_ref[:, 1:H + 1, :] = h
    up = pad_ref[:, 0:H, :]          # h[r-1] (0 at r == 0)
    down = pad_ref[:, 2:H + 2, :]    # h[r+1] (0 at r == H-1)
    return up + (h + h) + down


def _blur_fused_kernel(x_ref, o_ref, pad_ref):
    x = x_ref[...].astype(jnp.float32)            # (TB, H, W)
    W = x.shape[-1]
    v = _vblur(_hblur(x, W), pad_ref)
    o_ref[...] = (v * jnp.float32(_INV_SUM)).astype(o_ref.dtype)


def _hpass_kernel(x_ref, o_ref):
    x = x_ref[...].astype(jnp.float32)            # (1, TH, W)
    o_ref[...] = _hblur(x, x.shape[-1]).astype(o_ref.dtype)


def _vpass_kernel(h_ref, o_ref, pad_ref):
    v = _vblur(h_ref[...], pad_ref)               # (1, H, TW)
    o_ref[...] = (v * jnp.float32(_INV_SUM)).astype(o_ref.dtype)


# ---------------------------------------------------------------------------
# Tiling heuristics
# ---------------------------------------------------------------------------

def _pick_tb(n_planes, plane_vmem, bud):
    """Planes per grid step for the fused path (divisor of n_planes)."""
    cap_vmem = max(1, bud["tile_budget"] // (_LIVE_COPIES * plane_vmem))
    # Keep >= _MIN_STEPS grid steps when the input is big enough that the
    # per-step overhead stays small; tiny inputs prefer one big step.
    cap_steps = n_planes
    if n_planes >= _MIN_STEPS and (n_planes // _MIN_STEPS) * plane_vmem >= _STEP_FLOOR:
        cap_steps = n_planes // _MIN_STEPS
    goal = min(cap_vmem, cap_steps,
               max(1, bud["target_step_bytes"] // plane_vmem))
    divisors = [d for d in range(1, n_planes + 1)
                if n_planes % d == 0 and d <= cap_vmem]
    under = [d for d in divisors if d <= goal]
    return max(under) if under else min(divisors)


def _pick_strip(dim, row_bytes, bud, align):
    """Strip length along `dim` for the two-pass fallback (divisor of dim).

    Prefers strips that keep the block's tiled dims aligned (multiple of
    `align`, or the full dim), fit the VMEM budget and land near the per-step
    HBM-traffic target.
    """
    cap = max(1, bud["tile_budget"] // (_LIVE_COPIES * row_bytes))
    target = max(1, bud["target_step_bytes"] // row_bytes)
    divisors = [d for d in range(1, dim + 1) if dim % d == 0 and d <= cap]
    aligned = [d for d in divisors if d % align == 0 or d == dim]
    pool = aligned if aligned else divisors
    under = [d for d in pool if d <= target]
    return max(under) if under else min(pool)


# ---------------------------------------------------------------------------
# Wrappers
# ---------------------------------------------------------------------------

def _blur_one_pass(x, bud, plane_vmem):
    B, C, H, W = x.shape
    N = B * C
    x3 = x.reshape(N, H, W)                       # leading-dim collapse: free
    tb = _pick_tb(N, plane_vmem, bud)
    out = pl.pallas_call(
        _blur_fused_kernel,
        out_shape=jax.ShapeDtypeStruct((N, H, W), x.dtype),
        grid_spec=pltpu.PrefetchScalarGridSpec(
            num_scalar_prefetch=0,
            grid=(N // tb,),
            in_specs=[pl.BlockSpec((tb, H, W), lambda i: (i, 0, 0))],
            out_specs=pl.BlockSpec((tb, H, W), lambda i: (i, 0, 0)),
            scratch_shapes=[pltpu.VMEM((tb, H + 2, W), jnp.float32)],
        ),
        compiler_params=pltpu.CompilerParams(
            dimension_semantics=("parallel",),
            vmem_limit_bytes=bud["vmem_limit"]),
    )(x3)
    return out.reshape(B, C, H, W)


def _blur_two_pass(x, bud):
    """Fallback for planes whose working set exceeds the VMEM budget.

    Pass 1: horizontal [1,2,1], tiling H (rows are independent).
    Pass 2: vertical [1,2,1] + 1/16 scale, tiling W (columns are independent).
    Costs one extra HBM round trip for the intermediate, but keeps every block
    small regardless of resolution.
    """
    B, C, H, W = x.shape
    N = B * C
    x3 = x.reshape(N, H, W)
    wpad = _round_up(W, 128)

    th = _pick_strip(H, 4 * wpad, bud, align=8)
    h = pl.pallas_call(
        _hpass_kernel,
        out_shape=jax.ShapeDtypeStruct((N, H, W), jnp.float32),
        grid_spec=pltpu.PrefetchScalarGridSpec(
            num_scalar_prefetch=0,
            grid=(N, H // th),
            in_specs=[pl.BlockSpec((1, th, W), lambda p, i: (p, i, 0))],
            out_specs=pl.BlockSpec((1, th, W), lambda p, i: (p, i, 0)),
        ),
        compiler_params=pltpu.CompilerParams(
            dimension_semantics=("parallel", "parallel"),
            vmem_limit_bytes=bud["vmem_limit"]),
    )(x3)

    # TODO(synk): extremely tall images (H so large that even a 128-wide column
    # strip exceeds the VMEM budget) would additionally need H-strip halo DMA.
    tw = _pick_strip(W, 4 * H, bud, align=128)
    out = pl.pallas_call(
        _vpass_kernel,
        out_shape=jax.ShapeDtypeStruct((N, H, W), x.dtype),
        grid_spec=pltpu.PrefetchScalarGridSpec(
            num_scalar_prefetch=0,
            grid=(N, W // tw),
            in_specs=[pl.BlockSpec((1, H, tw), lambda p, j: (p, 0, j))],
            out_specs=pl.BlockSpec((1, H, tw), lambda p, j: (p, 0, j)),
            scratch_shapes=[pltpu.VMEM((1, H + 2, tw), jnp.float32)],
        ),
        compiler_params=pltpu.CompilerParams(
            dimension_semantics=("parallel", "parallel"),
            vmem_limit_bytes=bud["vmem_limit"]),
    )(h)
    return out.reshape(B, C, H, W)


def blur(x):
    """x: (B, C, H, W) -> (B, C, H, W); depthwise 3x3 [1,2,1]x[1,2,1]/16 blur."""
    B, C, H, W = x.shape
    plane_vmem = 4 * H * _round_up(W, 128)        # f32, lane-padded VMEM bytes
    bud = _budgets()
    if _LIVE_COPIES * plane_vmem <= bud["tile_budget"]:
        return _blur_one_pass(x, bud, plane_vmem)
    return _blur_two_pass(x, bud)


# ---------------------------------------------------------------------------
# Pure-JAX reference (matches torch F.conv2d(..., padding=1, groups=C))
# ---------------------------------------------------------------------------

def _blur_reference(x):
    B, C, H, W = x.shape
    w = jnp.array([[1.0, 2.0, 1.0],
                   [2.0, 4.0, 2.0],
                   [1.0, 2.0, 1.0]], jnp.float32) / 16.0
    w = jnp.broadcast_to(w[None, None], (C, 1, 3, 3))          # OIHW, depthwise
    return jax.lax.conv_general_dilated(
        x, w, window_strides=(1, 1), padding=((1, 1), (1, 1)),
        dimension_numbers=("NCHW", "OIHW", "NCHW"),
        feature_group_count=C)


if __name__ == "__main__":
    key = jax.random.PRNGKey(0)
    B, C, H, W = 2, 4, 16, 16
    x = jax.random.normal(key, (B, C, H, W), dtype=jnp.float32)

    out = blur(x)
    jax.block_until_ready(out)
    assert out.shape == (B, C, H, W)
    assert jnp.allclose(out, _blur_reference(x), atol=1e-5, rtol=1e-5)

    # Also exercise the large-plane two-pass fallback path at a small shape.
    x2 = jax.random.normal(jax.random.PRNGKey(0), (1, 2, 16, 128),
                           dtype=jnp.float32)
    out2 = _blur_two_pass(x2, _budgets())
    jax.block_until_ready(out2)
    assert jnp.allclose(out2, _blur_reference(x2), atol=1e-5, rtol=1e-5)

    print("KERNEL_OK")
</pallas_src>

<mosaic_0001>
module attributes {stable_mosaic.version = 11 : i64} {
  func.func @_blur_fused_kernel(%arg0: i32, %arg1: memref<8x16x16xf32, #tpu.memory_space<vmem>>, %arg2: memref<8x16x16xf32, #tpu.memory_space<vmem>>, %arg3: memref<8x18x16xf32, #tpu.memory_space<vmem>>) attributes {dimension_semantics = [#tpu.dimension_semantics<parallel>], iteration_bounds = array<i64: 1>, scalar_prefetch = 0 : i64, scratch_operands = 1 : i64, tpu.core_type = #tpu.core_type<tc>, window_params = [{transform_indices = @transform_0, window_bounds = array<i64: 8, 16, 16>}, {transform_indices = @transform_1, window_bounds = array<i64: 8, 16, 16>}]} {
    %c0 = arith.constant 0 : index
    %c0_0 = arith.constant 0 : index
    %c0_1 = arith.constant 0 : index
    %0 = vector.load %arg1[%c0, %c0_0, %c0_1] : memref<8x16x16xf32, #tpu.memory_space<vmem>>, vector<8x16x16xf32>
    %1 = tpu.iota {dimensions = array<i32: 2>} : vector<1x1x16xi32>
    %c0_i32 = arith.constant 0 : i32
    %2 = vector.broadcast %c0_i32 : i32 to vector<1x1x16xi32>
    %3 = arith.cmpi eq, %1, %2 : vector<1x1x16xi32>
    %c1_i32 = arith.constant 1 : i32
    %4 = tpu.dynamic_rotate %0 by %c1_i32 dim 2 : vector<8x16x16xf32>, i32 -> vector<8x16x16xf32>
    %cst = arith.constant 0.000000e+00 : f32
    %5 = vector.shape_cast %3 : vector<1x1x16xi1> to vector<1x1x16xi1>
    %6 = vector.broadcast %5 : vector<1x1x16xi1> to vector<8x16x16xi1>
    %7 = vector.broadcast %cst : f32 to vector<8x16x16xf32>
    %8 = arith.select %6, %7, %4 : vector<8x16x16xi1>, vector<8x16x16xf32>
    %c15_i32 = arith.constant 15 : i32
    %9 = vector.broadcast %c15_i32 : i32 to vector<1x1x16xi32>
    %10 = arith.cmpi eq, %1, %9 : vector<1x1x16xi32>
    %c15_i32_2 = arith.constant 15 : i32
    %11 = tpu.dynamic_rotate %0 by %c15_i32_2 dim 2 : vector<8x16x16xf32>, i32 -> vector<8x16x16xf32>
    %cst_3 = arith.constant 0.000000e+00 : f32
    %12 = vector.shape_cast %10 : vector<1x1x16xi1> to vector<1x1x16xi1>
    %13 = vector.broadcast %12 : vector<1x1x16xi1> to vector<8x16x16xi1>
    %14 = vector.broadcast %cst_3 : f32 to vector<8x16x16xf32>
    %15 = arith.select %13, %14, %11 : vector<8x16x16xi1>, vector<8x16x16xf32>
    %16 = arith.addf %0, %0 : vector<8x16x16xf32>
    %17 = arith.addf %8, %16 : vector<8x16x16xf32>
    %18 = arith.addf %17, %15 : vector<8x16x16xf32>
    %cst_4 = arith.constant 0.000000e+00 : f32
    %19 = vector.broadcast %cst_4 : f32 to vector<8x1x16xf32>
    %c0_5 = arith.constant 0 : index
    %c0_6 = arith.constant 0 : index
    %c0_7 = arith.constant 0 : index
    %20 = vector.load %arg3[%c0_5, %c0_6, %c0_7] : memref<8x18x16xf32, #tpu.memory_space<vmem>>, vector<8x1x16xf32>
    tpu.vector_store %arg3[%c0_5, %c0_6, %c0_7], %19 {strides = array<i32>} : memref<8x18x16xf32, #tpu.memory_space<vmem>>, vector<8x1x16xf32>,
    %c0_8 = arith.constant 0 : index
    %c17 = arith.constant 17 : index
    %c0_9 = arith.constant 0 : index
    %21 = vector.load %arg3[%c0_8, %c17, %c0_9] : memref<8x18x16xf32, #tpu.memory_space<vmem>>, vector<8x1x16xf32>
    tpu.vector_store %arg3[%c0_8, %c17, %c0_9], %19 {strides = array<i32>} : memref<8x18x16xf32, #tpu.memory_space<vmem>>, vector<8x1x16xf32>,
    %c0_10 = arith.constant 0 : index
    %c1 = arith.constant 1 : index
    %c0_11 = arith.constant 0 : index
    %22 = vector.load %arg3[%c0_10, %c1, %c0_11] : memref<8x18x16xf32, #tpu.memory_space<vmem>>, vector<8x16x16xf32>
    tpu.vector_store %arg3[%c0_10, %c1, %c0_11], %18 {strides = array<i32>} : memref<8x18x16xf32, #tpu.memory_space<vmem>>, vector<8x16x16xf32>,
    %c0_12 = arith.constant 0 : index
    %c0_13 = arith.constant 0 : index
    %c0_14 = arith.constant 0 : index
    %23 = vector.load %arg3[%c0_12, %c0_13, %c0_14] : memref<8x18x16xf32, #tpu.memory_space<vmem>>, vector<8x16x16xf32>
    %c0_15 = arith.constant 0 : index
    %c2 = arith.constant 2 : index
    %c0_16 = arith.constant 0 : index
    %24 = vector.load %arg3[%c0_15, %c2, %c0_16] : memref<8x18x16xf32, #tpu.memory_space<vmem>>, vector<8x16x16xf32>
    %25 = arith.addf %18, %18 : vector<8x16x16xf32>
    %26 = arith.addf %23, %25 : vector<8x16x16xf32>
    %27 = arith.addf %26, %24 : vector<8x16x16xf32>
    %cst_17 = arith.constant 6.250000e-02 : f32
    %28 = vector.broadcast %cst_17 : f32 to vector<8x16x16xf32>
    %29 = arith.mulf %27, %28 : vector<8x16x16xf32>
    %c0_18 = arith.constant 0 : index
    %c0_19 = arith.constant 0 : index
    %c0_20 = arith.constant 0 : index
    %30 = vector.load %arg2[%c0_18, %c0_19, %c0_20] : memref<8x16x16xf32, #tpu.memory_space<vmem>>, vector<8x16x16xf32>
    tpu.vector_store %arg2[%c0_18, %c0_19, %c0_20], %29 {strides = array<i32>} : memref<8x16x16xf32, #tpu.memory_space<vmem>>, vector<8x16x16xf32>,
    return
  }
  func.func @transform_0(%arg0: i32) -> (i32, i32, i32) {
    %c0_i32 = arith.constant 0 : i32
    %c0_i32_0 = arith.constant 0 : i32
    %c0_i32_1 = arith.constant 0 : i32
    return %arg0, %c0_i32, %c0_i32_0 : i32, i32, i32
  }
  func.func @transform_1(%arg0: i32) -> (i32, i32, i32) {
    %c0_i32 = arith.constant 0 : i32
    %c0_i32_0 = arith.constant 0 : i32
    %c0_i32_1 = arith.constant 0 : i32
    return %arg0, %c0_i32, %c0_i32_0 : i32, i32, i32
  }
}

</mosaic_0001>

<llo_original>
// kernel: tpu_custom_call.1
$region0: #{tpu_custom_call.1}
  #allocation0 [shape = 'u32[]', space=smem, size = 0x4, offset = 0x4, fixed_abs, tag = 'smem constant byte address 0x4 - core index']
  #allocation1 [shape = 'u32[144,128]{1,0:T(1,128)}', space=vmem, size = 0x12000, scoped, tag = 'internal scratch']
  #allocation2 [shape = 'f32[8,18,16]{2,1,0:T(8,128)}', space=vmem, size = 0x18000, scoped, tag = 'scratch operand']
  %s0 = inlined_call_operand.hbm [shape: f32[8,16,16], index: 0, kind: input, shape index: {}]
  %s1 = inlined_call_operand.hbm [shape: f32[8,16,16], index: 1, kind: output, shape index: {}]
  %s2 = sld [smem:[#allocation0]]
  $region18: #{tpu_custom_call.1} parent=0
    _
  %s4 = ssub.s32 1, %s2
  %s5 = scalar_select 0, %s4, %s2
  $region1: #{tpu_custom_call.1} parent=0
    #allocation3 [shape = 'u8[65536]{0}', space=vmem, size = 0x10000, scoped, tag = 'input window, operand 0, single buffered']
    #allocation4 [shape = 's32[1]{0}', space=sflag, size = 0x4, scoped, tag = 'scoped memory for tpu_custom_call.1']
    #allocation5 [shape = 's32[1]{0}', space=sflag, size = 0x4, scoped, tag = 'scoped memory for tpu_custom_call.1']
    #allocation6 [shape = 'u8[65536]{0}', space=vmem, size = 0x10000, scoped, tag = 'output window, operand 0, single buffered']
    %6 = vsyncpa [#allocation4], 0
    %7 = vsyncpa [#allocation5], 0
    // Predicated region
    $region2: #{tpu_custom_call.1} parent=1 // pred_check
      _
    $region3: #{tpu_custom_call.1} parent=1 // pred_check_branch
      %9 = sbr.rel (0) target = $region5
    $region4: #{tpu_custom_call.1} parent=1 // pred_region
      %s11 = ssub.s32 2048, 2048
      %12 = vsyncadd [#allocation4], %s11
      %s13 = sshll.u32 [#allocation3], 4
      %s14 = int_to_ptr.vmem [resolvable:$true] %s13
      %19 = dma.hbm_to_vmem [thread:$0]  %s0, 2048, %s14, [#allocation4], 128, 128, 8
    $region5: #{tpu_custom_call.1} parent=1 // pred_fallthru
      _
    // Predicated region
    $region6: #{tpu_custom_call.1} parent=1 // pred_check
      _
    $region7: #{tpu_custom_call.1} parent=1 // pred_check_branch
      %21 = sbr.rel (0) target = $region9
    $region8: #{tpu_custom_call.1} parent=1 // pred_region
      %22 = dma.done [#allocation4], 2048
    $region9: #{tpu_custom_call.1} parent=1 // pred_fallthru
      _
    %v23 = vld [vmem:[#allocation3] sm:$0xff]
    %v24 = vld [vmem:[#allocation3 + $0x8] sm:$0xff]
    %v25 = vld [vmem:[#allocation3 + $0x10] sm:$0xff]
    %v26 = vld [vmem:[#allocation3 + $0x18] sm:$0xff]
    %v27 = vld [vmem:[#allocation3 + $0x20] sm:$0xff]
    %v28 = vld [vmem:[#allocation3 + $0x28] sm:$0xff]
    %v29 = vld [vmem:[#allocation3 + $0x30] sm:$0xff]
    %v30 = vld [vmem:[#allocation3 + $0x38] sm:$0xff]
    %v31 = vld [vmem:[#allocation3 + $0x40] sm:$0xff]
    %v32 = vld [vmem:[#allocation3 + $0x48] sm:$0xff]
    %v33 = vld [vmem:[#allocation3 + $0x50] sm:$0xff]
    %v34 = vld [vmem:[#allocation3 + $0x58] sm:$0xff]
    %v35 = vld [vmem:[#allocation3 + $0x60] sm:$0xff]
    %v36 = vld [vmem:[#allocation3 + $0x68] sm:$0xff]
    %v37 = vld [vmem:[#allocation3 + $0x70] sm:$0xff]
    %v38 = vld [vmem:[#allocation3 + $0x78] sm:$0xff]
    %v39 = vlaneseq
    %v40 = vand.u32 %v39, 127
    %vm41 = vcmp.eq.s32.totalorder %v40, 0
    %vm42 = vcmask 1047680
    %43 = vrot.lane.b32.xlu0 %v23, 16
    %v44 = vpop.permute.xlu0 %43
    %v45 = vsel %vm42, %v44, %v23
    %46 = vrot.lane.b32.xlu0 %v24, 16
    %v47 = vpop.permute.xlu0 %46
    %v48 = vsel %vm42, %v47, %v24
    %49 = vrot.lane.b32.xlu0 %v25, 16
    %v50 = vpop.permute.xlu0 %49
    %v51 = vsel %vm42, %v50, %v25
    %52 = vrot.lane.b32.xlu0 %v26, 16
    %v53 = vpop.permute.xlu0 %52
    %v54 = vsel %vm42, %v53, %v26
    %55 = vrot.lane.b32.xlu0 %v27, 16
    %v56 = vpop.permute.xlu0 %55
    %v57 = vsel %vm42, %v56, %v27
    %58 = vrot.lane.b32.xlu0 %v28, 16
    %v59 = vpop.permute.xlu0 %58
    %v60 = vsel %vm42, %v59, %v28
    %61 = vrot.lane.b32.xlu0 %v29, 16
    %v62 = vpop.permute.xlu0 %61
    %v63 = vsel %vm42, %v62, %v29
    %64 = vrot.lane.b32.xlu0 %v30, 16
    %v65 = vpop.permute.xlu0 %64
    %v66 = vsel %vm42, %v65, %v30
    %67 = vrot.lane.b32.xlu0 %v31, 16
    %v68 = vpop.permute.xlu0 %67
    %v69 = vsel %vm42, %v68, %v31
    %70 = vrot.lane.b32.xlu0 %v32, 16
    %v71 = vpop.permute.xlu0 %70
    %v72 = vsel %vm42, %v71, %v32
    %73 = vrot.lane.b32.xlu0 %v33, 16
    %v74 = vpop.permute.xlu0 %73
    %v75 = vsel %vm42, %v74, %v33
    %76 = vrot.lane.b32.xlu0 %v34, 16
    %v77 = vpop.permute.xlu0 %76
    %v78 = vsel %vm42, %v77, %v34
    %79 = vrot.lane.b32.xlu0 %v35, 16
    %v80 = vpop.permute.xlu0 %79
    %v81 = vsel %vm42, %v80, %v35
    %82 = vrot.lane.b32.xlu0 %v36, 16
    %v83 = vpop.permute.xlu0 %82
    %v84 = vsel %vm42, %v83, %v36
    %85 = vrot.lane.b32.xlu0 %v37, 16
    %v86 = vpop.permute.xlu0 %85
    %v87 = vsel %vm42, %v86, %v37
    %88 = vrot.lane.b32.xlu0 %v38, 16
    %v89 = vpop.permute.xlu0 %88
    %v90 = vsel %vm42, %v89, %v38
    %91 = vrot.lane.b32.xlu0 %v45, 16
    %v92 = vpop.permute.xlu0 %91
    %93 = vrot.lane.b32.xlu0 %v48, 16
    %v94 = vpop.permute.xlu0 %93
    %95 = vrot.lane.b32.xlu0 %v51, 16
    %v96 = vpop.permute.xlu0 %95
    %97 = vrot.lane.b32.xlu0 %v54, 16
    %v98 = vpop.permute.xlu0 %97
    %99 = vrot.lane.b32.xlu0 %v57, 16
    %v100 = vpop.permute.xlu0 %99
    %101 = vrot.lane.b32.xlu0 %v60, 16
    %v102 = vpop.permute.xlu0 %101
    %103 = vrot.lane.b32.xlu0 %v63, 16
    %v104 = vpop.permute.xlu0 %103
    %105 = vrot.lane.b32.xlu0 %v66, 16
    %v106 = vpop.permute.xlu0 %105
    %107 = vrot.lane.b32.xlu0 %v69, 16
    %v108 = vpop.permute.xlu0 %107
    %109 = vrot.lane.b32.xlu0 %v72, 16
    %v110 = vpop.permute.xlu0 %109
    %111 = vrot.lane.b32.xlu0 %v75, 16
    %v112 = vpop.permute.xlu0 %111
    %113 = vrot.lane.b32.xlu0 %v78, 16
    %v114 = vpop.permute.xlu0 %113
    %115 = vrot.lane.b32.xlu0 %v81, 16
    %v116 = vpop.permute.xlu0 %115
    %117 = vrot.lane.b32.xlu0 %v84, 16
    %v118 = vpop.permute.xlu0 %117
    %119 = vrot.lane.b32.xlu0 %v87, 16
    %v120 = vpop.permute.xlu0 %119
    %121 = vrot.lane.b32.xlu0 %v90, 16
    %v122 = vpop.permute.xlu0 %121
    %v123 = vsel %vm42, %v92, %v23
    %v124 = vsel %vm42, %v94, %v24
    %v125 = vsel %vm42, %v96, %v25
    %v126 = vsel %vm42, %v98, %v26
    %v127 = vsel %vm42, %v100, %v27
    %v128 = vsel %vm42, %v102, %v28
    %v129 = vsel %vm42, %v104, %v29
    %v130 = vsel %vm42, %v106, %v30
    %v131 = vsel %vm42, %v108, %v31
    %v132 = vsel %vm42, %v110, %v32
    %v133 = vsel %vm42, %v112, %v33
    %v134 = vsel %vm42, %v114, %v34
    %v135 = vsel %vm42, %v116, %v35
    %v136 = vsel %vm42, %v118, %v36
    %v137 = vsel %vm42, %v120, %v37
    %v138 = vsel %vm42, %v122, %v38
    %v139 = vsel %vm41, 1, 0
    %vm140 = vcmp.eq.s32.totalorder %v139, 1
    %157 = vrot.lane.b32.xlu0 %v123, 113
    %v158 = vpop.permute.xlu0 %157
    %159 = vrot.lane.b32.xlu0 %v124, 113
    %v160 = vpop.permute.xlu0 %159
    %161 = vrot.lane.b32.xlu0 %v125, 113
    %v162 = vpop.permute.xlu0 %161
    %163 = vrot.lane.b32.xlu0 %v126, 113
    %v164 = vpop.permute.xlu0 %163
    %165 = vrot.lane.b32.xlu0 %v127, 113
    %v166 = vpop.permute.xlu0 %165
    %167 = vrot.lane.b32.xlu0 %v128, 113
    %v168 = vpop.permute.xlu0 %167
    %169 = vrot.lane.b32.xlu0 %v129, 113
    %v170 = vpop.permute.xlu0 %169
    %171 = vrot.lane.b32.xlu0 %v130, 113
    %v172 = vpop.permute.xlu0 %171
    %173 = vrot.lane.b32.xlu0 %v131, 113
    %v174 = vpop.permute.xlu0 %173
    %175 = vrot.lane.b32.xlu0 %v132, 113
    %v176 = vpop.permute.xlu0 %175
    %177 = vrot.lane.b32.xlu0 %v133, 113
    %v178 = vpop.permute.xlu0 %177
    %179 = vrot.lane.b32.xlu0 %v134, 113
    %v180 = vpop.permute.xlu0 %179
    %181 = vrot.lane.b32.xlu0 %v135, 113
    %v182 = vpop.permute.xlu0 %181
    %183 = vrot.lane.b32.xlu0 %v136, 113
    %v184 = vpop.permute.xlu0 %183
    %185 = vrot.lane.b32.xlu0 %v137, 113
    %v186 = vpop.permute.xlu0 %185
    %187 = vrot.lane.b32.xlu0 %v138, 113
    %v188 = vpop.permute.xlu0 %187
    %v205 = vsel %vm140, 0.0, %v158
    %v206 = vsel %vm140, 0.0, %v160
    %v207 = vsel %vm140, 0.0, %v162
    %v208 = vsel %vm140, 0.0, %v164
    %v209 = vsel %vm140, 0.0, %v166
    %v210 = vsel %vm140, 0.0, %v168
    %v211 = vsel %vm140, 0.0, %v170
    %v212 = vsel %vm140, 0.0, %v172
    %v213 = vsel %vm140, 0.0, %v174
    %v214 = vsel %vm140, 0.0, %v176
    %v215 = vsel %vm140, 0.0, %v178
    %v216 = vsel %vm140, 0.0, %v180
    %v217 = vsel %vm140, 0.0, %v182
    %v218 = vsel %vm140, 0.0, %v184
    %v219 = vsel %vm140, 0.0, %v186
    %v220 = vsel %vm140, 0.0, %v188
    %vm221 = vcmp.eq.s32.totalorder %v40, 15
    %v222 = vsel %vm221, 1, 0
    %vm223 = vcmp.eq.s32.totalorder %v222, 1
    %224 = vrot.lane.b32.xlu0 %v123, 127
    %v225 = vpop.permute.xlu0 %224
    %226 = vrot.lane.b32.xlu0 %v124, 127
    %v227 = vpop.permute.xlu0 %226
    %228 = vrot.lane.b32.xlu0 %v125, 127
    %v229 = vpop.permute.xlu0 %228
    %230 = vrot.lane.b32.xlu0 %v126, 127
    %v231 = vpop.permute.xlu0 %230
    %232 = vrot.lane.b32.xlu0 %v127, 127
    %v233 = vpop.permute.xlu0 %232
    %234 = vrot.lane.b32.xlu0 %v128, 127
    %v235 = vpop.permute.xlu0 %234
    %236 = vrot.lane.b32.xlu0 %v129, 127
    %v237 = vpop.permute.xlu0 %236
    %238 = vrot.lane.b32.xlu0 %v130, 127
    %v239 = vpop.permute.xlu0 %238
    %240 = vrot.lane.b32.xlu0 %v131, 127
    %v241 = vpop.permute.xlu0 %240
    %242 = vrot.lane.b32.xlu0 %v132, 127
    %v243 = vpop.permute.xlu0 %242
    %244 = vrot.lane.b32.xlu0 %v133, 127
    %v245 = vpop.permute.xlu0 %244
    %246 = vrot.lane.b32.xlu0 %v134, 127
    %v247 = vpop.permute.xlu0 %246
    %248 = vrot.lane.b32.xlu0 %v135, 127
    %v249 = vpop.permute.xlu0 %248
    %250 = vrot.lane.b32.xlu0 %v136, 127
    %v251 = vpop.permute.xlu0 %250
    %252 = vrot.lane.b32.xlu0 %v137, 127
    %v253 = vpop.permute.xlu0 %252
    %254 = vrot.lane.b32.xlu0 %v138, 127
    %v255 = vpop.permute.xlu0 %254
    %v272 = vsel %vm223, 0.0, %v225
    %v273 = vsel %vm223, 0.0, %v227
    %v274 = vsel %vm223, 0.0, %v229
    %v275 = vsel %vm223, 0.0, %v231
    %v276 = vsel %vm223, 0.0, %v233
    %v277 = vsel %vm223, 0.0, %v235
    %v278 = vsel %vm223, 0.0, %v237
    %v279 = vsel %vm223, 0.0, %v239
    %v280 = vsel %vm223, 0.0, %v241
    %v281 = vsel %vm223, 0.0, %v243
    %v282 = vsel %vm223, 0.0, %v245
    %v283 = vsel %vm223, 0.0, %v247
    %v284 = vsel %vm223, 0.0, %v249
    %v285 = vsel %vm223, 0.0, %v251
    %v286 = vsel %vm223, 0.0, %v253
    %v287 = vsel %vm223, 0.0, %v255
    %v288 = vadd.f32 %v23, %v23
    %v289 = vadd.f32 %v24, %v24
    %v290 = vadd.f32 %v25, %v25
    %v291 = vadd.f32 %v26, %v26
    %v292 = vadd.f32 %v27, %v27
    %v293 = vadd.f32 %v28, %v28
    %v294 = vadd.f32 %v29, %v29
    %v295 = vadd.f32 %v30, %v30
    %v296 = vadd.f32 %v31, %v31
    %v297 = vadd.f32 %v32, %v32
    %v298 = vadd.f32 %v33, %v33
    %v299 = vadd.f32 %v34, %v34
    %v300 = vadd.f32 %v35, %v35
    %v301 = vadd.f32 %v36, %v36
    %v302 = vadd.f32 %v37, %v37
    %v303 = vadd.f32 %v38, %v38
    %v304 = vadd.f32 %v205, %v288
    %v305 = vadd.f32 %v206, %v289
    %v306 = vadd.f32 %v207, %v290
    %v307 = vadd.f32 %v208, %v291
    %v308 = vadd.f32 %v209, %v292
    %v309 = vadd.f32 %v210, %v293
    %v310 = vadd.f32 %v211, %v294
    %v311 = vadd.f32 %v212, %v295
    %v312 = vadd.f32 %v213, %v296
    %v313 = vadd.f32 %v214, %v297
    %v314 = vadd.f32 %v215, %v298
    %v315 = vadd.f32 %v216, %v299
    %v316 = vadd.f32 %v217, %v300
    %v317 = vadd.f32 %v218, %v301
    %v318 = vadd.f32 %v219, %v302
    %v319 = vadd.f32 %v220, %v303
    %v320 = vadd.f32 %v304, %v272
    %v321 = vadd.f32 %v305, %v273
    %v322 = vadd.f32 %v306, %v274
    %v323 = vadd.f32 %v307, %v275
    %v324 = vadd.f32 %v308, %v276
    %v325 = vadd.f32 %v309, %v277
    %v326 = vadd.f32 %v310, %v278
    %v327 = vadd.f32 %v311, %v279
    %v328 = vadd.f32 %v312, %v280
    %v329 = vadd.f32 %v313, %v281
    %v330 = vadd.f32 %v314, %v282
    %v331 = vadd.f32 %v315, %v283
    %v332 = vadd.f32 %v316, %v284
    %v333 = vadd.f32 %v317, %v285
    %v334 = vadd.f32 %v318, %v286
    %v335 = vadd.f32 %v319, %v287
    %vm336 = vcmask 122880
    %337 = vst.msk [vmem:[#allocation2] sm:$0x1] %vm336, 0.0
    %338 = vst.msk [vmem:[#allocation2 + $0x18] sm:$0x1] %vm336, 0.0
    %339 = vst.msk [vmem:[#allocation2 + $0x30] sm:$0x1] %vm336, 0.0
    %340 = vst.msk [vmem:[#allocation2 + $0x48] sm:$0x1] %vm336, 0.0
    %341 = vst.msk [vmem:[#allocation2 + $0x60] sm:$0x1] %vm336, 0.0
    %342 = vst.msk [vmem:[#allocation2 + $0x78] sm:$0x1] %vm336, 0.0
    %343 = vst.msk [vmem:[#allocation2 + $0x90] sm:$0x1] %vm336, 0.0
    %344 = vst.msk [vmem:[#allocation2 + $0xa8] sm:$0x1] %vm336, 0.0
    %345 = vst.msk [vmem:[#allocation2 + $0x11] sm:$0x1] %vm336, 0.0
    %346 = vst.msk [vmem:[#allocation2 + $0x29] sm:$0x1] %vm336, 0.0
    %347 = vst.msk [vmem:[#allocation2 + $0x41] sm:$0x1] %vm336, 0.0
    %348 = vst.msk [vmem:[#allocation2 + $0x59] sm:$0x1] %vm336, 0.0
    %349 = vst.msk [vmem:[#allocation2 + $0x71] sm:$0x1] %vm336, 0.0
    %350 = vst.msk [vmem:[#allocation2 + $0x89] sm:$0x1] %vm336, 0.0
    %351 = vst.msk [vmem:[#allocation2 + $0xa1] sm:$0x1] %vm336, 0.0
    %352 = vst.msk [vmem:[#allocation2 + $0xb9] sm:$0x1] %vm336, 0.0
    %vm353 = vcmask 130048
    %354 = vst.msk [vmem:[#allocation2 + $0x1] sm:$0xff] %vm353, %v320
    %355 = vst.msk [vmem:[#allocation2 + $0x9] sm:$0xff] %vm353, %v321
    %356 = vst.msk [vmem:[#allocation2 + $0x19] sm:$0xff] %vm353, %v322
    %357 = vst.msk [vmem:[#allocation2 + $0x21] sm:$0xff] %vm353, %v323
    %358 = vst.msk [vmem:[#allocation2 + $0x31] sm:$0xff] %vm353, %v324
    %359 = vst.msk [vmem:[#allocation2 + $0x39] sm:$0xff] %vm353, %v325
    %360 = vst.msk [vmem:[#allocation2 + $0x49] sm:$0xff] %vm353, %v326
    %361 = vst.msk [vmem:[#allocation2 + $0x51] sm:$0xff] %vm353, %v327
    %362 = vst.msk [vmem:[#allocation2 + $0x61] sm:$0xff] %vm353, %v328
    %363 = vst.msk [vmem:[#allocation2 + $0x69] sm:$0xff] %vm353, %v329
    %364 = vst.msk [vmem:[#allocation2 + $0x79] sm:$0xff] %vm353, %v330
    %365 = vst.msk [vmem:[#allocation2 + $0x81] sm:$0xff] %vm353, %v331
    %366 = vst.msk [vmem:[#allocation2 + $0x91] sm:$0xff] %vm353, %v332
    %367 = vst.msk [vmem:[#allocation2 + $0x99] sm:$0xff] %vm353, %v333
    %368 = vst.msk [vmem:[#allocation2 + $0xa9] sm:$0xff] %vm353, %v334
    %369 = vst.msk [vmem:[#allocation2 + $0xb1] sm:$0xff] %vm353, %v335
    %v370 = vld [vmem:[#allocation2] sm:$0xff]
    %v371 = vld [vmem:[#allocation2 + $0x8] sm:$0xff]
    %v372 = vld [vmem:[#allocation2 + $0x18] sm:$0xff]
    %v373 = vld [vmem:[#allocation2 + $0x20] sm:$0xff]
    %v374 = vld [vmem:[#allocation2 + $0x30] sm:$0xff]
    %v375 = vld [vmem:[#allocation2 + $0x38] sm:$0xff]
    %v376 = vld [vmem:[#allocation2 + $0x48] sm:$0xff]
    %v377 = vld [vmem:[#allocation2 + $0x50] sm:$0xff]
    %v378 = vld [vmem:[#allocation2 + $0x60] sm:$0xff]
    %v379 = vld [vmem:[#allocation2 + $0x68] sm:$0xff]
    %v380 = vld [vmem:[#allocation2 + $0x78] sm:$0xff]
    %v381 = vld [vmem:[#allocation2 + $0x80] sm:$0xff]
    %v382 = vld [vmem:[#allocation2 + $0x90] sm:$0xff]
    %v383 = vld [vmem:[#allocation2 + $0x98] sm:$0xff]
    %v384 = vld [vmem:[#allocation2 + $0xa8] sm:$0xff]
    %v385 = vld [vmem:[#allocation2 + $0xb0] sm:$0xff]
    %v386 = vld [vmem:[#allocation2 + $0x2] sm:$0xff]
    %v387 = vld [vmem:[#allocation2 + $0xa] sm:$0xff]
    %v388 = vld [vmem:[#allocation2 + $0x1a] sm:$0xff]
    %v389 = vld [vmem:[#allocation2 + $0x22] sm:$0xff]
    %v390 = vld [vmem:[#allocation2 + $0x32] sm:$0xff]
    %v391 = vld [vmem:[#allocation2 + $0x3a] sm:$0xff]
    %v392 = vld [vmem:[#allocation2 + $0x4a] sm:$0xff]
    %v393 = vld [vmem:[#allocation2 + $0x52] sm:$0xff]
    %v394 = vld [vmem:[#allocation2 + $0x62] sm:$0xff]
    %v395 = vld [vmem:[#allocation2 + $0x6a] sm:$0xff]
    %v396 = vld [vmem:[#allocation2 + $0x7a] sm:$0xff]
    %v397 = vld [vmem:[#allocation2 + $0x82] sm:$0xff]
    %v398 = vld [vmem:[#allocation2 + $0x92] sm:$0xff]
    %v399 = vld [vmem:[#allocation2 + $0x9a] sm:$0xff]
    %v400 = vld [vmem:[#allocation2 + $0xaa] sm:$0xff]
    %v401 = vld [vmem:[#allocation2 + $0xb2] sm:$0xff]
    %v402 = vadd.f32 %v320, %v320
    %v403 = vadd.f32 %v321, %v321
    %v404 = vadd.f32 %v322, %v322
    %v405 = vadd.f32 %v323, %v323
    %v406 = vadd.f32 %v324, %v324
    %v407 = vadd.f32 %v325, %v325
    %v408 = vadd.f32 %v326, %v326
    %v409 = vadd.f32 %v327, %v327
    %v410 = vadd.f32 %v328, %v328
    %v411 = vadd.f32 %v329, %v329
    %v412 = vadd.f32 %v330, %v330
    %v413 = vadd.f32 %v331, %v331
    %v414 = vadd.f32 %v332, %v332
    %v415 = vadd.f32 %v333, %v333
    %v416 = vadd.f32 %v334, %v334
    %v417 = vadd.f32 %v335, %v335
    %v418 = vadd.f32 %v370, %v402
    %v419 = vadd.f32 %v371, %v403
    %v420 = vadd.f32 %v372, %v404
    %v421 = vadd.f32 %v373, %v405
    %v422 = vadd.f32 %v374, %v406
    %v423 = vadd.f32 %v375, %v407
    %v424 = vadd.f32 %v376, %v408
    %v425 = vadd.f32 %v377, %v409
    %v426 = vadd.f32 %v378, %v410
    %v427 = vadd.f32 %v379, %v411
    %v428 = vadd.f32 %v380, %v412
    %v429 = vadd.f32 %v381, %v413
    %v430 = vadd.f32 %v382, %v414
    %v431 = vadd.f32 %v383, %v415
    %v432 = vadd.f32 %v384, %v416
    %v433 = vadd.f32 %v385, %v417
    %v434 = vadd.f32 %v418, %v386
    %v435 = vadd.f32 %v419, %v387
    %v436 = vadd.f32 %v420, %v388
    %v437 = vadd.f32 %v421, %v389
    %v438 = vadd.f32 %v422, %v390
    %v439 = vadd.f32 %v423, %v391
    %v440 = vadd.f32 %v424, %v392
    %v441 = vadd.f32 %v425, %v393
    %v442 = vadd.f32 %v426, %v394
    %v443 = vadd.f32 %v427, %v395
    %v444 = vadd.f32 %v428, %v396
    %v445 = vadd.f32 %v429, %v397
    %v446 = vadd.f32 %v430, %v398
    %v447 = vadd.f32 %v431, %v399
    %v448 = vadd.f32 %v432, %v400
    %v449 = vadd.f32 %v433, %v401
    %v450 = vmul.f32 %v434, 0.0625
    %v451 = vmul.f32 %v435, 0.0625
    %v452 = vmul.f32 %v436, 0.0625
    %v453 = vmul.f32 %v437, 0.0625
    %v454 = vmul.f32 %v438, 0.0625
    %v455 = vmul.f32 %v439, 0.0625
    %v456 = vmul.f32 %v440, 0.0625
    %v457 = vmul.f32 %v441, 0.0625
    %v458 = vmul.f32 %v442, 0.0625
    %v459 = vmul.f32 %v443, 0.0625
    %v460 = vmul.f32 %v444, 0.0625
    %v461 = vmul.f32 %v445, 0.0625
    %v462 = vmul.f32 %v446, 0.0625
    %v463 = vmul.f32 %v447, 0.0625
    %v464 = vmul.f32 %v448, 0.0625
    %v465 = vmul.f32 %v449, 0.0625
    %466 = vst.msk [vmem:[#allocation6] sm:$0xff] %vm353, %v450
    %467 = vst.msk [vmem:[#allocation6 + $0x8] sm:$0xff] %vm353, %v451
    %468 = vst.msk [vmem:[#allocation6 + $0x10] sm:$0xff] %vm353, %v452
    %469 = vst.msk [vmem:[#allocation6 + $0x18] sm:$0xff] %vm353, %v453
    %470 = vst.msk [vmem:[#allocation6 + $0x20] sm:$0xff] %vm353, %v454
    %471 = vst.msk [vmem:[#allocation6 + $0x28] sm:$0xff] %vm353, %v455
    %472 = vst.msk [vmem:[#allocation6 + $0x30] sm:$0xff] %vm353, %v456
    %473 = vst.msk [vmem:[#allocation6 + $0x38] sm:$0xff] %vm353, %v457
    %474 = vst.msk [vmem:[#allocation6 + $0x40] sm:$0xff] %vm353, %v458
    %475 = vst.msk [vmem:[#allocation6 + $0x48] sm:$0xff] %vm353, %v459
    %476 = vst.msk [vmem:[#allocation6 + $0x50] sm:$0xff] %vm353, %v460
    %477 = vst.msk [vmem:[#allocation6 + $0x58] sm:$0xff] %vm353, %v461
    %478 = vst.msk [vmem:[#allocation6 + $0x60] sm:$0xff] %vm353, %v462
    %479 = vst.msk [vmem:[#allocation6 + $0x68] sm:$0xff] %vm353, %v463
    %480 = vst.msk [vmem:[#allocation6 + $0x70] sm:$0xff] %vm353, %v464
    %481 = vst.msk [vmem:[#allocation6 + $0x78] sm:$0xff] %vm353, %v465
    // Predicated region
    $region10: #{tpu_custom_call.1} parent=1 // pred_check
      _
    $region11: #{tpu_custom_call.1} parent=1 // pred_check_branch
      %483 = sbr.rel (0) target = $region13
    $region12: #{tpu_custom_call.1} parent=1 // pred_region
      %s485 = ssub.s32 2048, 2048
      %486 = vsyncadd [#allocation5], %s485
      %s487 = sshll.u32 [#allocation6], 4
      %s488 = int_to_ptr.vmem [resolvable:$true] %s487
      %493 = dma.vmem_to_hbm [thread:$0]  %s488, 2048, %s1, [#allocation5], 128, 128, 8
    $region13: #{tpu_custom_call.1} parent=1 // pred_fallthru
      _
    // Predicated region
    $region14: #{tpu_custom_call.1} parent=1 // pred_check
      _
    $region15: #{tpu_custom_call.1} parent=1 // pred_check_branch
      %495 = sbr.rel (0) target = $region17
    $region16: #{tpu_custom_call.1} parent=1 // pred_region
      %496 = dma.done [#allocation5], 2048
    $region17: #{tpu_custom_call.1} parent=1 // pred_fallthru
      _
    %497 = vsyncpa [#allocation4], 1
    %498 = vsyncpa [#allocation5], 1

</llo_original>
